<compile_context>
chip_gen: v6e
topology: v6e:2x2x1
jax: 0.10.0
libtpu: 0.0.40
codegen_flags: <defaults>
</compile_context>

<pallas_src>
import functools

import jax
import jax.numpy as jnp
from jax import lax
from jax.experimental import pallas as pl
from jax.experimental.pallas import tpu as pltpu

STATE_SIZE = 4
ACTION_SIZE = 1
HIDDEN = 256
IN_DIM = STATE_SIZE + ACTION_SIZE   # 5 logical input features
IN_PAD = 8                          # K padded to a sublane multiple
OUT_PAD = 128                       # N padded to full lane width (unmasked vst)
SUB_M = 128                         # inner row sub-tile (caps vreg pressure)


def mlp_kernel(x_ref, w1_ref, b1_ref, w2_ref, b2_ref, w3_ref, b3_ref,
               w4_ref, b4_ref, o_ref, *, sub_m, n_sub):
    # Biases hoisted once per grid step; weights stream from VMEM into the MXU.
    b1 = b1_ref[...]
    b2 = b2_ref[...]
    b3 = b3_ref[...]
    b4 = b4_ref[...]

    def body(s, carry):
        r = pl.multiple_of(s * sub_m, sub_m)
        x = x_ref[pl.ds(r, sub_m), :]                      # bf16 (sub_m, 8)
        # bf16 operands on the MXU, f32 accumulate; bias + ReLU in f32 on VPU.
        h = jnp.dot(x, w1_ref[...], preferred_element_type=jnp.float32)
        h = jnp.maximum(h + b1, 0.0).astype(jnp.bfloat16)
        h = jnp.dot(h, w2_ref[...], preferred_element_type=jnp.float32)
        h = jnp.maximum(h + b2, 0.0).astype(jnp.bfloat16)
        h = jnp.dot(h, w3_ref[...], preferred_element_type=jnp.float32)
        h = jnp.maximum(h + b3, 0.0).astype(jnp.bfloat16)
        y = jnp.dot(h, w4_ref[...], preferred_element_type=jnp.float32) + b4
        o_ref[pl.ds(r, sub_m), :] = y.astype(o_ref.dtype)  # bf16 store
        return carry

    lax.fori_loop(0, n_sub, body, 0, unroll=True)


def _round_up(n, m):
    return ((n + m - 1) // m) * m


def mlp_forward(x, params, *, tile_m=512):
    """x: (batch, 5) f32. params: padded bf16 weights / f32 biases."""
    (w1, b1, w2, b2, w3, b3, w4, b4) = params
    batch = x.shape[0]

    if batch <= SUB_M:
        # Small-batch latency path: single grid step, single sub-tile.
        pb = max(8, _round_up(batch, 8))
        tm = pb
        sub_m = pb
    else:
        pb = _round_up(batch, SUB_M)
        tm = max(SUB_M, (min(tile_m, pb) // SUB_M) * SUB_M)
        # v7x: guarantee >=2 grid steps so the second TensorCore gets work.
        if pb // tm < 2:
            tm = max(SUB_M, ((pb // 2) // SUB_M) * SUB_M)
        pb = _round_up(pb, tm)
        sub_m = SUB_M

    n_sub = tm // sub_m
    grid = (pb // tm,)

    # Fused pad + cast: build the padded input directly in bf16.
    xp = jnp.zeros((pb, IN_PAD), jnp.bfloat16)
    xp = xp.at[:batch, :IN_DIM].set(x.astype(jnp.bfloat16))

    resident = lambda i: (0, 0)   # weights/biases fetched once, VMEM-resident

    flops = 2 * pb * (IN_PAD * HIDDEN + 2 * HIDDEN * HIDDEN + HIDDEN * OUT_PAD)
    bytes_accessed = int(
        xp.size * xp.dtype.itemsize
        + sum(int(p.size) * p.dtype.itemsize for p in params)
        + pb * OUT_PAD * 2)

    kernel = functools.partial(mlp_kernel, sub_m=sub_m, n_sub=n_sub)

    out = pl.pallas_call(
        kernel,
        out_shape=jax.ShapeDtypeStruct((pb, OUT_PAD), jnp.bfloat16),
        grid=grid,
        in_specs=[
            pl.BlockSpec((tm, IN_PAD), lambda i: (i, 0)),
            pl.BlockSpec((IN_PAD, HIDDEN), resident),
            pl.BlockSpec((1, HIDDEN), resident),
            pl.BlockSpec((HIDDEN, HIDDEN), resident),
            pl.BlockSpec((1, HIDDEN), resident),
            pl.BlockSpec((HIDDEN, HIDDEN), resident),
            pl.BlockSpec((1, HIDDEN), resident),
            pl.BlockSpec((HIDDEN, OUT_PAD), resident),
            pl.BlockSpec((1, OUT_PAD), resident),
        ],
        out_specs=pl.BlockSpec((tm, OUT_PAD), lambda i: (i, 0)),
        compiler_params=pltpu.CompilerParams(
            dimension_semantics=("parallel",)),
        cost_estimate=pl.CostEstimate(flops=flops, transcendentals=0,
                                      bytes_accessed=bytes_accessed),
    )(xp, w1, b1, w2, b2, w3, b3, w4, b4)

    # Slice the real batch rows and the real 4 output columns; return f32 to
    # match the PyTorch module's output dtype.
    return out[:batch, :STATE_SIZE].astype(jnp.float32)


def init_linear(key, fan_in, fan_out, *, pad_in=None, pad_out=None):
    # PyTorch nn.Linear default init: U(-1/sqrt(fan_in), 1/sqrt(fan_in)),
    # zero-padded to TPU-friendly shapes; weights stored bf16, biases f32.
    kw, kb = jax.random.split(key)
    bound = 1.0 / jnp.sqrt(fan_in)
    w = jax.random.uniform(kw, (fan_in, fan_out), jnp.float32, -bound, bound)
    b = jax.random.uniform(kb, (1, fan_out), jnp.float32, -bound, bound)
    pin = pad_in if pad_in is not None else fan_in
    pout = pad_out if pad_out is not None else fan_out
    wp = jnp.zeros((pin, pout), jnp.float32).at[:fan_in, :fan_out].set(w)
    bp = jnp.zeros((1, pout), jnp.float32).at[:, :fan_out].set(b)
    return wp.astype(jnp.bfloat16), bp


def make_params(key):
    k1, k2, k3, k4 = jax.random.split(key, 4)
    w1, b1 = init_linear(k1, IN_DIM, HIDDEN, pad_in=IN_PAD)
    w2, b2 = init_linear(k2, HIDDEN, HIDDEN)
    w3, b3 = init_linear(k3, HIDDEN, HIDDEN)
    w4, b4 = init_linear(k4, HIDDEN, STATE_SIZE, pad_out=OUT_PAD)
    return (w1, b1, w2, b2, w3, b3, w4, b4)


def reference_forward(x, params):
    # Same mixed-precision path as the kernel (bf16 operands, f32 accumulate,
    # bf16 final store). NOTE: vs an f32 PyTorch Linear stack the error is
    # ~1e-2 relative from the bf16 casts — acceptable for this use.
    (w1, b1, w2, b2, w3, b3, w4, b4) = params
    batch = x.shape[0]
    xp = jnp.zeros((batch, IN_PAD), jnp.bfloat16).at[:, :IN_DIM].set(
        x.astype(jnp.bfloat16))
    h = jnp.maximum(jnp.dot(xp, w1, preferred_element_type=jnp.float32) + b1, 0.0)
    h = jnp.maximum(jnp.dot(h.astype(jnp.bfloat16), w2,
                            preferred_element_type=jnp.float32) + b2, 0.0)
    h = jnp.maximum(jnp.dot(h.astype(jnp.bfloat16), w3,
                            preferred_element_type=jnp.float32) + b3, 0.0)
    y = jnp.dot(h.astype(jnp.bfloat16), w4,
                preferred_element_type=jnp.float32) + b4
    return y.astype(jnp.bfloat16)[:, :STATE_SIZE].astype(jnp.float32)


if __name__ == "__main__":
    key = jax.random.PRNGKey(0)
    kx, kp = jax.random.split(key)
    params = make_params(kp)

    # Input is concat([state (4), action (1)]) -> 5 features.
    # Small-batch latency path (single grid step, single sub-tile).
    x_small = jax.random.normal(kx, (8, IN_DIM), jnp.float32)
    out_small = jax.block_until_ready(mlp_forward(x_small, params))
    ref_small = reference_forward(x_small, params)
    assert out_small.shape == (8, STATE_SIZE)
    assert jnp.allclose(out_small, ref_small, atol=2e-2, rtol=2e-2)

    # Larger batch exercising the tiled path (>=2 grid steps for megacore).
    x_big = jax.random.normal(kx, (300, IN_DIM), jnp.float32)
    out_big = jax.block_until_ready(mlp_forward(x_big, params, tile_m=512))
    ref_big = reference_forward(x_big, params)
    assert out_big.shape == (300, STATE_SIZE)
    assert jnp.allclose(out_big, ref_big, atol=2e-2, rtol=2e-2)

    print("KERNEL_OK")
</pallas_src>

<mosaic_0001>
module attributes {stable_mosaic.version = 11 : i64} {
  func.func @mlp_kernel(%arg0: i32, %arg1: memref<8x8xbf16, #tpu.memory_space<vmem>>, %arg2: memref<8x256xbf16, #tpu.memory_space<vmem>>, %arg3: memref<1x256xf32, #tpu.memory_space<vmem>>, %arg4: memref<256x256xbf16, #tpu.memory_space<vmem>>, %arg5: memref<1x256xf32, #tpu.memory_space<vmem>>, %arg6: memref<256x256xbf16, #tpu.memory_space<vmem>>, %arg7: memref<1x256xf32, #tpu.memory_space<vmem>>, %arg8: memref<256x128xbf16, #tpu.memory_space<vmem>>, %arg9: memref<1x128xf32, #tpu.memory_space<vmem>>, %arg10: memref<8x128xbf16, #tpu.memory_space<vmem>>) attributes {dimension_semantics = [#tpu.dimension_semantics<parallel>], iteration_bounds = array<i64: 1>, scalar_prefetch = 0 : i64, scratch_operands = 0 : i64, tpu.core_type = #tpu.core_type<tc>, window_params = [{transform_indices = @transform_0, window_bounds = array<i64: 8, 8>}, {pipeline_mode = #tpu.pipeline_mode<synchronous>, transform_indices = @transform_1, window_bounds = array<i64: 8, 256>}, {pipeline_mode = #tpu.pipeline_mode<synchronous>, transform_indices = @transform_2, window_bounds = array<i64: 1, 256>}, {pipeline_mode = #tpu.pipeline_mode<synchronous>, transform_indices = @transform_3, window_bounds = array<i64: 256, 256>}, {pipeline_mode = #tpu.pipeline_mode<synchronous>, transform_indices = @transform_4, window_bounds = array<i64: 1, 256>}, {pipeline_mode = #tpu.pipeline_mode<synchronous>, transform_indices = @transform_5, window_bounds = array<i64: 256, 256>}, {pipeline_mode = #tpu.pipeline_mode<synchronous>, transform_indices = @transform_6, window_bounds = array<i64: 1, 256>}, {pipeline_mode = #tpu.pipeline_mode<synchronous>, transform_indices = @transform_7, window_bounds = array<i64: 256, 128>}, {pipeline_mode = #tpu.pipeline_mode<synchronous>, transform_indices = @transform_8, window_bounds = array<i64: 1, 128>}, {transform_indices = @transform_9, window_bounds = array<i64: 8, 128>}]} {
    %c0 = arith.constant 0 : index
    %c0_0 = arith.constant 0 : index
    %0 = vector.load %arg3[%c0, %c0_0] : memref<1x256xf32, #tpu.memory_space<vmem>>, vector<1x256xf32>
    %c0_1 = arith.constant 0 : index
    %c0_2 = arith.constant 0 : index
    %1 = vector.load %arg5[%c0_1, %c0_2] : memref<1x256xf32, #tpu.memory_space<vmem>>, vector<1x256xf32>
    %c0_3 = arith.constant 0 : index
    %c0_4 = arith.constant 0 : index
    %2 = vector.load %arg7[%c0_3, %c0_4] : memref<1x256xf32, #tpu.memory_space<vmem>>, vector<1x256xf32>
    %c0_5 = arith.constant 0 : index
    %c0_6 = arith.constant 0 : index
    %3 = vector.load %arg9[%c0_5, %c0_6] : memref<1x128xf32, #tpu.memory_space<vmem>>, vector<1x128xf32>
    %c0_i32 = arith.constant 0 : i32
    %c8_i32 = arith.constant 8 : i32
    %4 = arith.muli %c0_i32, %c8_i32 : i32
    %5 = tpu.assume_multiple %4, 8 : i32
    %6 = arith.index_cast %5 : i32 to index
    %c0_7 = arith.constant 0 : index
    %7 = vector.load %arg1[%6, %c0_7] : memref<8x8xbf16, #tpu.memory_space<vmem>>, vector<8x8xbf16>
    %c0_8 = arith.constant 0 : index
    %c0_9 = arith.constant 0 : index
    %8 = vector.load %arg2[%c0_8, %c0_9] : memref<8x256xbf16, #tpu.memory_space<vmem>>, vector<8x256xbf16>
    %cst = arith.constant dense<0.000000e+00> : vector<8x256xf32>
    %9 = tpu.matmul %7, %8, %cst {dimension_numbers = #tpu.dot_dimension_numbers<[1], [0], [0], [1], [0, 0, 1, 1], [], []>} : vector<8x8xbf16>, vector<8x256xbf16>, vector<8x256xf32> -> vector<8x256xf32>
    %10 = vector.broadcast %0 : vector<1x256xf32> to vector<8x256xf32>
    %11 = arith.addf %9, %10 : vector<8x256xf32>
    %cst_10 = arith.constant 0.000000e+00 : f32
    %12 = vector.broadcast %cst_10 : f32 to vector<8x256xf32>
    %13 = arith.maximumf %11, %12 : vector<8x256xf32>
    %14 = arith.truncf %13 : vector<8x256xf32> to vector<8x256xbf16>
    %c0_11 = arith.constant 0 : index
    %c0_12 = arith.constant 0 : index
    %15 = vector.load %arg4[%c0_11, %c0_12] : memref<256x256xbf16, #tpu.memory_space<vmem>>, vector<256x256xbf16>
    %cst_13 = arith.constant dense<0.000000e+00> : vector<8x256xf32>
    %16 = tpu.matmul %14, %15, %cst_13 {dimension_numbers = #tpu.dot_dimension_numbers<[1], [0], [0], [1], [0, 0, 1, 1], [], []>} : vector<8x256xbf16>, vector<256x256xbf16>, vector<8x256xf32> -> vector<8x256xf32>
    %17 = vector.broadcast %1 : vector<1x256xf32> to vector<8x256xf32>
    %18 = arith.addf %16, %17 : vector<8x256xf32>
    %cst_14 = arith.constant 0.000000e+00 : f32
    %19 = vector.broadcast %cst_14 : f32 to vector<8x256xf32>
    %20 = arith.maximumf %18, %19 : vector<8x256xf32>
    %21 = arith.truncf %20 : vector<8x256xf32> to vector<8x256xbf16>
    %c0_15 = arith.constant 0 : index
    %c0_16 = arith.constant 0 : index
    %22 = vector.load %arg6[%c0_15, %c0_16] : memref<256x256xbf16, #tpu.memory_space<vmem>>, vector<256x256xbf16>
    %cst_17 = arith.constant dense<0.000000e+00> : vector<8x256xf32>
    %23 = tpu.matmul %21, %22, %cst_17 {dimension_numbers = #tpu.dot_dimension_numbers<[1], [0], [0], [1], [0, 0, 1, 1], [], []>} : vector<8x256xbf16>, vector<256x256xbf16>, vector<8x256xf32> -> vector<8x256xf32>
    %24 = vector.broadcast %2 : vector<1x256xf32> to vector<8x256xf32>
    %25 = arith.addf %23, %24 : vector<8x256xf32>
    %cst_18 = arith.constant 0.000000e+00 : f32
    %26 = vector.broadcast %cst_18 : f32 to vector<8x256xf32>
    %27 = arith.maximumf %25, %26 : vector<8x256xf32>
    %28 = arith.truncf %27 : vector<8x256xf32> to vector<8x256xbf16>
    %c0_19 = arith.constant 0 : index
    %c0_20 = arith.constant 0 : index
    %29 = vector.load %arg8[%c0_19, %c0_20] : memref<256x128xbf16, #tpu.memory_space<vmem>>, vector<256x128xbf16>
    %cst_21 = arith.constant dense<0.000000e+00> : vector<8x128xf32>
    %30 = tpu.matmul %28, %29, %cst_21 {dimension_numbers = #tpu.dot_dimension_numbers<[1], [0], [0], [1], [0, 0, 1, 1], [], []>} : vector<8x256xbf16>, vector<256x128xbf16>, vector<8x128xf32> -> vector<8x128xf32>
    %31 = vector.broadcast %3 : vector<1x128xf32> to vector<8x128xf32>
    %32 = arith.addf %30, %31 : vector<8x128xf32>
    %33 = arith.truncf %32 : vector<8x128xf32> to vector<8x128xbf16>
    %34 = arith.index_cast %5 : i32 to index
    %c0_22 = arith.constant 0 : index
    %35 = vector.load %arg10[%34, %c0_22] : memref<8x128xbf16, #tpu.memory_space<vmem>>, vector<8x128xbf16>
    tpu.vector_store %arg10[%34, %c0_22], %33 {strides = array<i32>} : memref<8x128xbf16, #tpu.memory_space<vmem>>, vector<8x128xbf16>,
    %c1_i32 = arith.constant 1 : i32
    return
  }
  func.func @transform_0(%arg0: i32) -> (i32, i32) {
    %c0_i32 = arith.constant 0 : i32
    %c0_i32_0 = arith.constant 0 : i32
    return %arg0, %c0_i32 : i32, i32
  }
  func.func @transform_1(%arg0: i32) -> (i32, i32) {
    %c0_i32 = arith.constant 0 : i32
    %c0_i32_0 = arith.constant 0 : i32
    %c0_i32_1 = arith.constant 0 : i32
    return %c0_i32, %c0_i32_0 : i32, i32
  }
  func.func @transform_2(%arg0: i32) -> (i32, i32) {
    %c0_i32 = arith.constant 0 : i32
    %c0_i32_0 = arith.constant 0 : i32
    %c0_i32_1 = arith.constant 0 : i32
    return %c0_i32, %c0_i32_0 : i32, i32
  }
  func.func @transform_3(%arg0: i32) -> (i32, i32) {
    %c0_i32 = arith.constant 0 : i32
    %c0_i32_0 = arith.constant 0 : i32
    %c0_i32_1 = arith.constant 0 : i32
    return %c0_i32, %c0_i32_0 : i32, i32
  }
  func.func @transform_4(%arg0: i32) -> (i32, i32) {
    %c0_i32 = arith.constant 0 : i32
    %c0_i32_0 = arith.constant 0 : i32
    %c0_i32_1 = arith.constant 0 : i32
    return %c0_i32, %c0_i32_0 : i32, i32
  }
  func.func @transform_5(%arg0: i32) -> (i32, i32) {
    %c0_i32 = arith.constant 0 : i32
    %c0_i32_0 = arith.constant 0 : i32
    %c0_i32_1 = arith.constant 0 : i32
    return %c0_i32, %c0_i32_0 : i32, i32
  }
  func.func @transform_6(%arg0: i32) -> (i32, i32) {
    %c0_i32 = arith.constant 0 : i32
    %c0_i32_0 = arith.constant 0 : i32
    %c0_i32_1 = arith.constant 0 : i32
    return %c0_i32, %c0_i32_0 : i32, i32
  }
  func.func @transform_7(%arg0: i32) -> (i32, i32) {
    %c0_i32 = arith.constant 0 : i32
    %c0_i32_0 = arith.constant 0 : i32
    %c0_i32_1 = arith.constant 0 : i32
    return %c0_i32, %c0_i32_0 : i32, i32
  }
  func.func @transform_8(%arg0: i32) -> (i32, i32) {
    %c0_i32 = arith.constant 0 : i32
    %c0_i32_0 = arith.constant 0 : i32
    %c0_i32_1 = arith.constant 0 : i32
    return %c0_i32, %c0_i32_0 : i32, i32
  }
  func.func @transform_9(%arg0: i32) -> (i32, i32) {
    %c0_i32 = arith.constant 0 : i32
    %c0_i32_0 = arith.constant 0 : i32
    return %arg0, %c0_i32 : i32, i32
  }
}

</mosaic_0001>

<llo_original>
// kernel: tpu_custom_call.1
$region0: #{tpu_custom_call.1}
  #allocation0 [shape = 'u32[]', space=smem, size = 0x4, offset = 0x4, fixed_abs, tag = 'smem constant byte address 0x4 - core index']
  #allocation1 [shape = 'u32[144,128]{1,0:T(1,128)}', space=vmem, size = 0x12000, scoped, tag = 'internal scratch']
  %s0 = inlined_call_operand.hbm [shape: bf16[8,8], index: 0, kind: input, shape index: {}]
  %s1 = inlined_call_operand.hbm [shape: bf16[8,256], index: 1, kind: input, shape index: {}]
  %s2 = inlined_call_operand.vmem [shape: f32[1,256], index: 2, kind: input, shape index: {}]
  %s3 = inlined_call_operand.hbm [shape: bf16[256,256], index: 3, kind: input, shape index: {}]
  %s4 = inlined_call_operand.vmem [shape: f32[1,256], index: 4, kind: input, shape index: {}]
  %s5 = inlined_call_operand.hbm [shape: bf16[256,256], index: 5, kind: input, shape index: {}]
  %s6 = inlined_call_operand.vmem [shape: f32[1,256], index: 6, kind: input, shape index: {}]
  %s7 = inlined_call_operand.hbm [shape: bf16[256,128], index: 7, kind: input, shape index: {}]
  %s8 = inlined_call_operand.vmem [shape: f32[1,128], index: 8, kind: input, shape index: {}]
  %s9 = inlined_call_operand.hbm [shape: bf16[8,128], index: 9, kind: output, shape index: {}]
  %s10 = sld [smem:[#allocation0]]
  $region66: #{tpu_custom_call.1} parent=0
    _
  %s12 = ssub.s32 1, %s10
  %s13 = scalar_select 0, %s12, %s10
  $region1: #{tpu_custom_call.1} parent=0
    #allocation2 [shape = 'u8[2048]{0}', space=vmem, size = 0x800, scoped, tag = 'input window, operand 0, single buffered']
    #allocation3 [shape = 's32[1]{0}', space=sflag, size = 0x4, scoped, tag = 'scoped memory for tpu_custom_call.1']
    #allocation4 [shape = 's32[1]{0}', space=sflag, size = 0x4, scoped, tag = 'scoped memory for tpu_custom_call.1']
    #allocation5 [shape = 'u8[4096]{0}', space=vmem, size = 0x1000, scoped, tag = 'input window, operand 1, single buffered']
    #allocation6 [shape = 's32[1]{0}', space=sflag, size = 0x4, scoped, tag = 'scoped memory for tpu_custom_call.1']
    #allocation7 [shape = 'u8[131072]{0}', space=vmem, size = 0x20000, scoped, tag = 'input window, operand 3, single buffered']
    #allocation8 [shape = 'u8[131072]{0}', space=vmem, size = 0x20000, scoped, tag = 'input window, operand 5, single buffered']
    #allocation9 [shape = 's32[1]{0}', space=sflag, size = 0x4, scoped, tag = 'scoped memory for tpu_custom_call.1']
    #allocation10 [shape = 'u8[65536]{0}', space=vmem, size = 0x10000, scoped, tag = 'input window, operand 7, single buffered']
    #allocation11 [shape = 'u8[2048]{0}', space=vmem, size = 0x800, scoped, tag = 'output window, operand 0, single buffered']
    %14 = vsyncpa [#allocation3], 0
    %15 = vsyncpa [#allocation6], 0
    %16 = vsyncpa [#allocation9], 0
    %17 = vsyncpa [#allocation4], 0
    // Predicated region
    $region2: #{tpu_custom_call.1} parent=1 // pred_check
      _
    $region3: #{tpu_custom_call.1} parent=1 // pred_check_branch
      %19 = sbr.rel (0) target = $region5
    $region4: #{tpu_custom_call.1} parent=1 // pred_region
      %s21 = ssub.s32 64, 64
      %22 = vsyncadd [#allocation3], %s21
      %s24 = sshll.u32 [#allocation2], 4
      %s25 = int_to_ptr.vmem [resolvable:$true] %s24
      %27 = dma.hbm_to_vmem [thread:$0]  %s0, 64, %s25, [#allocation3]
    $region5: #{tpu_custom_call.1} parent=1 // pred_fallthru
      _
    // Predicated region
    $region6: #{tpu_custom_call.1} parent=1 // pred_check
      _
    $region7: #{tpu_custom_call.1} parent=1 // pred_check_branch
      %29 = sbr.rel (0) target = $region9
    $region8: #{tpu_custom_call.1} parent=1 // pred_region
      %s31 = ssub.s32 128, 128
      %32 = vsyncadd [#allocation6], %s31
      %s34 = sshll.u32 [#allocation5], 4
      %s35 = int_to_ptr.vmem [resolvable:$true] %s34
      %37 = dma.hbm_to_vmem [thread:$0]  %s1, 128, %s35, [#allocation6]
    $region9: #{tpu_custom_call.1} parent=1 // pred_fallthru
      _
    // Predicated region
    $region10: #{tpu_custom_call.1} parent=1 // pred_check
      _
    $region11: #{tpu_custom_call.1} parent=1 // pred_check_branch
      %39 = sbr.rel (0) target = $region13
    $region12: #{tpu_custom_call.1} parent=1 // pred_region
      _
    $region13: #{tpu_custom_call.1} parent=1 // pred_fallthru
      _
    // Predicated region
    $region14: #{tpu_custom_call.1} parent=1 // pred_check
      _
    $region15: #{tpu_custom_call.1} parent=1 // pred_check_branch
      %41 = sbr.rel (0) target = $region17
    $region16: #{tpu_custom_call.1} parent=1 // pred_region
      %s43 = ssub.s32 4096, 4096
      %44 = vsyncadd [#allocation6], %s43
      %s45 = sshll.u32 [#allocation7], 4
      %s46 = int_to_ptr.vmem [resolvable:$true] %s45
      %51 = dma.hbm_to_vmem [thread:$0]  %s3, 4096, %s46, [#allocation6], 128, 128, 8
    $region17: #{tpu_custom_call.1} parent=1 // pred_fallthru
      _
    // Predicated region
    $region18: #{tpu_custom_call.1} parent=1 // pred_check
      _
    $region19: #{tpu_custom_call.1} parent=1 // pred_check_branch
      %53 = sbr.rel (0) target = $region21
    $region20: #{tpu_custom_call.1} parent=1 // pred_region
      _
    $region21: #{tpu_custom_call.1} parent=1 // pred_fallthru
      _
    // Predicated region
    $region22: #{tpu_custom_call.1} parent=1 // pred_check
      _
    $region23: #{tpu_custom_call.1} parent=1 // pred_check_branch
      %55 = sbr.rel (0) target = $region25
    $region24: #{tpu_custom_call.1} parent=1 // pred_region
      %s57 = ssub.s32 4096, 4096
      %58 = vsyncadd [#allocation9], %s57
      %s59 = sshll.u32 [#allocation8], 4
      %s60 = int_to_ptr.vmem [resolvable:$true] %s59
      %65 = dma.hbm_to_vmem [thread:$0]  %s5, 4096, %s60, [#allocation9], 128, 128, 8
    $region25: #{tpu_custom_call.1} parent=1 // pred_fallthru
      _
    // Predicated region
    $region26: #{tpu_custom_call.1} parent=1 // pred_check
      _
    $region27: #{tpu_custom_call.1} parent=1 // pred_check_branch
      %67 = sbr.rel (0) target = $region29
    $region28: #{tpu_custom_call.1} parent=1 // pred_region
      _
    $region29: #{tpu_custom_call.1} parent=1 // pred_fallthru
      _
    // Predicated region
    $region30: #{tpu_custom_call.1} parent=1 // pred_check
      _
    $region31: #{tpu_custom_call.1} parent=1 // pred_check_branch
      %69 = sbr.rel (0) target = $region33
    $region32: #{tpu_custom_call.1} parent=1 // pred_region
      %s71 = ssub.s32 2048, 2048
      %72 = vsyncadd [#allocation9], %s71
      %s73 = sshll.u32 [#allocation10], 4
      %s74 = int_to_ptr.vmem [resolvable:$true] %s73
      %79 = dma.hbm_to_vmem [thread:$0]  %s7, 2048, %s74, [#allocation9], 64, 64, 4
    $region33: #{tpu_custom_call.1} parent=1 // pred_fallthru
      _
    // Predicated region
    $region34: #{tpu_custom_call.1} parent=1 // pred_check
      _
    $region35: #{tpu_custom_call.1} parent=1 // pred_check_branch
      %81 = sbr.rel (0) target = $region37
    $region36: #{tpu_custom_call.1} parent=1 // pred_region
      _
    $region37: #{tpu_custom_call.1} parent=1 // pred_fallthru
      _
    // Predicated region
    $region38: #{tpu_custom_call.1} parent=1 // pred_check
      _
    $region39: #{tpu_custom_call.1} parent=1 // pred_check_branch
      %83 = sbr.rel (0) target = $region41
    $region40: #{tpu_custom_call.1} parent=1 // pred_region
      %84 = dma.done [#allocation3], 64
    $region41: #{tpu_custom_call.1} parent=1 // pred_fallthru
      _
    // Predicated region
    $region42: #{tpu_custom_call.1} parent=1 // pred_check
      _
    $region43: #{tpu_custom_call.1} parent=1 // pred_check_branch
      %86 = sbr.rel (0) target = $region45
    $region44: #{tpu_custom_call.1} parent=1 // pred_region
      %87 = dma.done [#allocation6], 128
    $region45: #{tpu_custom_call.1} parent=1 // pred_fallthru
      _
    // Predicated region
    $region46: #{tpu_custom_call.1} parent=1 // pred_check
      _
    $region47: #{tpu_custom_call.1} parent=1 // pred_check_branch
      %89 = sbr.rel (0) target = $region49
    $region48: #{tpu_custom_call.1} parent=1 // pred_region
      %90 = dma.done [#allocation6], 4096
    $region49: #{tpu_custom_call.1} parent=1 // pred_fallthru
      _
    // Predicated region
    $region50: #{tpu_custom_call.1} parent=1 // pred_check
      _
    $region51: #{tpu_custom_call.1} parent=1 // pred_check_branch
      %92 = sbr.rel (0) target = $region53
    $region52: #{tpu_custom_call.1} parent=1 // pred_region
      %93 = dma.done [#allocation9], 4096
    $region53: #{tpu_custom_call.1} parent=1 // pred_fallthru
      _
    // Predicated region
    $region54: #{tpu_custom_call.1} parent=1 // pred_check
      _
    $region55: #{tpu_custom_call.1} parent=1 // pred_check_branch
      %95 = sbr.rel (0) target = $region57
    $region56: #{tpu_custom_call.1} parent=1 // pred_region
      %96 = dma.done [#allocation9], 2048
    $region57: #{tpu_custom_call.1} parent=1 // pred_fallthru
      _
    %v98 = vld [vmem:[%s2] sm:$0x3]
    %v99 = vld [vmem:[%s4] sm:$0x3]
    %v100 = vld [vmem:[%s6] sm:$0x3]
    %v101 = vld [vmem:[%s8] sm:$0x1]
    %v102 = vld [vmem:[#allocation2] sm:$0xf]
    %v103 = vld [vmem:[#allocation5] sm:$0xff]
    %v105 = vlaneseq
    %v106 = vshrl.u32 %v105, 7
    %v107 = vsub.s32 0, %v106
    %v108 = vrot.slane %v98, %v107
    %v109 = vlaneseq
    %v110 = vshrl.u32 %v109, 7
    %v111 = vsub.s32 1, %v110
    %v112 = vrot.slane %v98, %v111
    %v116 = vunpack.c.l.b16 %v103
    %v117 = vunpack.c.h.b16 %v103
    %v118 = vpack.c.b16 %v116, %v116
    %v119 = vpack.c.b16 %v117, %v117
    %vm120 = vcmask 64512
    %v122 = vsel %vm120, %v102, 0
    %vm124 = vcmask 1043456
    %v126 = vsel %vm124, %v118, 0
    %v129 = vsel %vm124, %v119, 0
    %131 = vmatprep.subr.bf16.mxu0 0
    %132 = vmatpush1.bf16.msra.mxu0 0
    %133 = vmatprep.subr.bf16.mxu0 0
    %134 = vmatpush1.bf16.msra.mxu0 0
    %135 = vmatprep.subr.bf16.mxu0 0
    %136 = vmatpush1.bf16.msra.mxu0 0
    %137 = vmatprep.subr.bf16.mxu0 0
    %138 = vmatpush1.bf16.msra.mxu0 0
    %139 = vmatprep.subr.bf16.mxu0 0
    %140 = vmatpush1.bf16.msra.mxu0 0
    %141 = vmatprep.subr.bf16.mxu0 0
    %142 = vmatpush1.bf16.msra.mxu0 0
    %143 = vmatprep.subr.bf16.mxu0 0
    %144 = vmatpush1.bf16.msra.mxu0 0
    %145 = vmatprep.subr.bf16.mxu0 %v129
    %146 = vmatpush1.bf16.msra.mxu0 %v126
    %147 = vmatprep.subr.bf16.mxu0 0
    %148 = vmatpush2.bf16.msra.mxu0 0
    %149 = vmatprep.subr.bf16.mxu0 0
    %150 = vmatpush2.bf16.msra.mxu0 0
    %151 = vmatprep.subr.bf16.mxu0 0
    %152 = vmatpush2.bf16.msra.mxu0 0
    %153 = vmatprep.subr.bf16.mxu0 0
    %154 = vmatpush2.bf16.msra.mxu0 0
    %155 = vmatprep.subr.bf16.mxu0 0
    %156 = vmatpush2.bf16.msra.mxu0 0
    %157 = vmatprep.subr.bf16.mxu0 0
    %158 = vmatpush2.bf16.msra.mxu0 0
    %159 = vmatprep.subr.bf16.mxu0 0
    %160 = vmatpush2.bf16.msra.mxu0 0
    %161 = vmatprep.subr.bf16.mxu0 0
    %162 = vmatpush2.bf16.msra.mxu0 0
    %163 = vmatprep.mubr.bf16.mxu0 0
    %164 = vmatmul.mubr.bf16.gmra.mxu0 %v122
    %v165 = vpop.f32.mrf.mxu0
    %v166 = vadd.f32 %v108, %v165
    %v167 = vpop.f32.mrf.mxu0
    %v168 = vadd.f32 %v112, %v167
    %v169 = vpop.f32.mrf.mxu0
    %v170 = vpop.f32.mrf.mxu0
    %171 = vdwg.mxu0
    %v172 = vmax.f32 %v166, 0.0
    %v173 = vmax.f32 %v168, 0.0
    %v174 = vpack.c.bf16 %v172, %v172
    %v175 = vpack.c.bf16 %v173, %v173
    %v176 = vld [vmem:[#allocation7] sm:$0xff]
    %v177 = vld [vmem:[#allocation7 + $0x8] sm:$0xff]
    %v178 = vld [vmem:[#allocation7 + $0x10] sm:$0xff]
    %v179 = vld [vmem:[#allocation7 + $0x18] sm:$0xff]
    %v180 = vld [vmem:[#allocation7 + $0x20] sm:$0xff]
    %v181 = vld [vmem:[#allocation7 + $0x28] sm:$0xff]
    %v182 = vld [vmem:[#allocation7 + $0x30] sm:$0xff]
    %v183 = vld [vmem:[#allocation7 + $0x38] sm:$0xff]
    %v184 = vld [vmem:[#allocation7 + $0x40] sm:$0xff]
    %v185 = vld [vmem:[#allocation7 + $0x48] sm:$0xff]
    %v186 = vld [vmem:[#allocation7 + $0x50] sm:$0xff]
    %v187 = vld [vmem:[#allocation7 + $0x58] sm:$0xff]
    %v188 = vld [vmem:[#allocation7 + $0x60] sm:$0xff]
    %v189 = vld [vmem:[#allocation7 + $0x68] sm:$0xff]
    %v190 = vld [vmem:[#allocation7 + $0x70] sm:$0xff]
    %v191 = vld [vmem:[#allocation7 + $0x78] sm:$0xff]
    %v192 = vld [vmem:[#allocation7 + $0x80] sm:$0xff]
    %v193 = vld [vmem:[#allocation7 + $0x88] sm:$0xff]
    %v194 = vld [vmem:[#allocation7 + $0x90] sm:$0xff]
    %v195 = vld [vmem:[#allocation7 + $0x98] sm:$0xff]
    %v196 = vld [vmem:[#allocation7 + $0xa0] sm:$0xff]
    %v197 = vld [vmem:[#allocation7 + $0xa8] sm:$0xff]
    %v198 = vld [vmem:[#allocation7 + $0xb0] sm:$0xff]
    %v199 = vld [vmem:[#allocation7 + $0xb8] sm:$0xff]
    %v200 = vld [vmem:[#allocation7 + $0xc0] sm:$0xff]
    %v201 = vld [vmem:[#allocation7 + $0xc8] sm:$0xff]
    %v202 = vld [vmem:[#allocation7 + $0xd0] sm:$0xff]
    %v203 = vld [vmem:[#allocation7 + $0xd8] sm:$0xff]
    %v204 = vld [vmem:[#allocation7 + $0xe0] sm:$0xff]
    %v205 = vld [vmem:[#allocation7 + $0xe8] sm:$0xff]
    %v206 = vld [vmem:[#allocation7 + $0xf0] sm:$0xff]
    %v207 = vld [vmem:[#allocation7 + $0xf8] sm:$0xff]
    %v209 = vlaneseq
    %v210 = vshrl.u32 %v209, 7
    %v211 = vsub.s32 0, %v210
    %v212 = vrot.slane %v99, %v211
    %v213 = vlaneseq
    %v214 = vshrl.u32 %v213, 7
    %v215 = vsub.s32 1, %v214
    %v216 = vrot.slane %v99, %v215
    %v251 = vunpack.c.l.b16 %v176
    %v252 = vunpack.c.h.b16 %v176
    %v253 = vunpack.c.l.b16 %v177
    %v254 = vunpack.c.h.b16 %v177
    %v255 = vunpack.c.l.b16 %v178
    %v256 = vunpack.c.h.b16 %v178
    %v257 = vunpack.c.l.b16 %v179
    %v258 = vunpack.c.h.b16 %v179
    %v259 = vunpack.c.l.b16 %v180
    %v260 = vunpack.c.h.b16 %v180
    %v261 = vunpack.c.l.b16 %v181
    %v262 = vunpack.c.h.b16 %v181
    %v263 = vunpack.c.l.b16 %v182
    %v264 = vunpack.c.h.b16 %v182
    %v265 = vunpack.c.l.b16 %v183
    %v266 = vunpack.c.h.b16 %v183
    %v267 = vunpack.c.l.b16 %v184
    %v268 = vunpack.c.h.b16 %v184
    %v269 = vunpack.c.l.b16 %v185
    %v270 = vunpack.c.h.b16 %v185
    %v271 = vunpack.c.l.b16 %v186
    %v272 = vunpack.c.h.b16 %v186
    %v273 = vunpack.c.l.b16 %v187
    %v274 = vunpack.c.h.b16 %v187
    %v275 = vunpack.c.l.b16 %v188
    %v276 = vunpack.c.h.b16 %v188
    %v277 = vunpack.c.l.b16 %v189
    %v278 = vunpack.c.h.b16 %v189
    %v279 = vunpack.c.l.b16 %v190
    %v280 = vunpack.c.h.b16 %v190
    %v281 = vunpack.c.l.b16 %v191
    %v282 = vunpack.c.h.b16 %v191
    %v283 = vunpack.c.l.b16 %v192
    %v284 = vunpack.c.h.b16 %v192
    %v285 = vunpack.c.l.b16 %v193
    %v286 = vunpack.c.h.b16 %v193
    %v287 = vunpack.c.l.b16 %v194
    %v288 = vunpack.c.h.b16 %v194
    %v289 = vunpack.c.l.b16 %v195
    %v290 = vunpack.c.h.b16 %v195
    %v291 = vunpack.c.l.b16 %v196
    %v292 = vunpack.c.h.b16 %v196
    %v293 = vunpack.c.l.b16 %v197
    %v294 = vunpack.c.h.b16 %v197
    %v295 = vunpack.c.l.b16 %v198
    %v296 = vunpack.c.h.b16 %v198
    %v297 = vunpack.c.l.b16 %v199
    %v298 = vunpack.c.h.b16 %v199
    %v299 = vunpack.c.l.b16 %v200
    %v300 = vunpack.c.h.b16 %v200
    %v301 = vunpack.c.l.b16 %v201
    %v302 = vunpack.c.h.b16 %v201
    %v303 = vunpack.c.l.b16 %v202
    %v304 = vunpack.c.h.b16 %v202
    %v305 = vunpack.c.l.b16 %v203
    %v306 = vunpack.c.h.b16 %v203
    %v307 = vunpack.c.l.b16 %v204
    %v308 = vunpack.c.h.b16 %v204
    %v309 = vunpack.c.l.b16 %v205
    %v310 = vunpack.c.h.b16 %v205
    %v311 = vunpack.c.l.b16 %v206
    %v312 = vunpack.c.h.b16 %v206
    %v313 = vunpack.c.l.b16 %v207
    %v314 = vunpack.c.h.b16 %v207
    %v315 = vpack.c.b16 %v253, %v251
    %v316 = vpack.c.b16 %v254, %v252
    %v317 = vpack.c.b16 %v257, %v255
    %v318 = vpack.c.b16 %v258, %v256
    %v319 = vpack.c.b16 %v261, %v259
    %v320 = vpack.c.b16 %v262, %v260
    %v321 = vpack.c.b16 %v265, %v263
    %v322 = vpack.c.b16 %v266, %v264
    %v323 = vpack.c.b16 %v269, %v267
    %v324 = vpack.c.b16 %v270, %v268
    %v325 = vpack.c.b16 %v273, %v271
    %v326 = vpack.c.b16 %v274, %v272
    %v327 = vpack.c.b16 %v277, %v275
    %v328 = vpack.c.b16 %v278, %v276
    %v329 = vpack.c.b16 %v281, %v279
    %v330 = vpack.c.b16 %v282, %v280
    %v331 = vpack.c.b16 %v285, %v283
    %v332 = vpack.c.b16 %v286, %v284
    %v333 = vpack.c.b16 %v289, %v287
    %v334 = vpack.c.b16 %v290, %v288
    %v335 = vpack.c.b16 %v293, %v291
    %v336 = vpack.c.b16 %v294, %v292
    %v337 = vpack.c.b16 %v297, %v295
    %v338 = vpack.c.b16 %v298, %v296
    %v339 = vpack.c.b16 %v301, %v299
    %v340 = vpack.c.b16 %v302, %v300
    %v341 = vpack.c.b16 %v305, %v303
    %v342 = vpack.c.b16 %v306, %v304
    %v343 = vpack.c.b16 %v309, %v307
    %v344 = vpack.c.b16 %v310, %v308
    %v345 = vpack.c.b16 %v313, %v311
    %v346 = vpack.c.b16 %v314, %v312
    %379 = vmatprep.subr.bf16.mxu0 %v330
    %380 = vmatpush1.bf16.msra.mxu0 %v329
    %381 = vmatprep.subr.bf16.mxu0 %v328
    %382 = vmatpush1.bf16.msra.mxu0 %v327
    %383 = vmatprep.subr.bf16.mxu0 %v326
    %384 = vmatpush1.bf16.msra.mxu0 %v325
    %385 = vmatprep.subr.bf16.mxu0 %v324
    %386 = vmatpush1.bf16.msra.mxu0 %v323
    %387 = vmatprep.subr.bf16.mxu0 %v322
    %388 = vmatpush1.bf16.msra.mxu0 %v321
    %389 = vmatprep.subr.bf16.mxu0 %v320
    %390 = vmatpush1.bf16.msra.mxu0 %v319
    %391 = vmatprep.subr.bf16.mxu0 %v318
    %392 = vmatpush1.bf16.msra.mxu0 %v317
    %393 = vmatprep.subr.bf16.mxu0 %v316
    %394 = vmatpush1.bf16.msra.mxu0 %v315
    %395 = vmatprep.subr.bf16.mxu0 %v346
    %396 = vmatpush2.bf16.msra.mxu0 %v345
    %397 = vmatprep.subr.bf16.mxu0 %v344
    %398 = vmatpush2.bf16.msra.mxu0 %v343
    %399 = vmatprep.subr.bf16.mxu0 %v342
    %400 = vmatpush2.bf16.msra.mxu0 %v341
    %401 = vmatprep.subr.bf16.mxu0 %v340
    %402 = vmatpush2.bf16.msra.mxu0 %v339
    %403 = vmatprep.subr.bf16.mxu0 %v338
    %404 = vmatpush2.bf16.msra.mxu0 %v337
    %405 = vmatprep.subr.bf16.mxu0 %v336
    %406 = vmatpush2.bf16.msra.mxu0 %v335
    %407 = vmatprep.subr.bf16.mxu0 %v334
    %408 = vmatpush2.bf16.msra.mxu0 %v333
    %409 = vmatprep.subr.bf16.mxu0 %v332
    %410 = vmatpush2.bf16.msra.mxu0 %v331
    %411 = vmatprep.mubr.bf16.mxu0 %v175
    %412 = vmatmul.mubr.bf16.gmra.mxu0 %v174
    %v413 = vpop.f32.mrf.mxu0
    %v414 = vadd.f32 %v212, %v413
    %v415 = vpop.f32.mrf.mxu0
    %v416 = vadd.f32 %v216, %v415
    %v417 = vpop.f32.mrf.mxu0
    %v418 = vpop.f32.mrf.mxu0
    %419 = vdwg.mxu0
    %v420 = vmax.f32 %v414, 0.0
    %v421 = vmax.f32 %v416, 0.0
    %v422 = vpack.c.bf16 %v420, %v420
    %v423 = vpack.c.bf16 %v421, %v421
    %v424 = vld [vmem:[#allocation8] sm:$0xff]
    %v425 = vld [vmem:[#allocation8 + $0x8] sm:$0xff]
    %v426 = vld [vmem:[#allocation8 + $0x10] sm:$0xff]
    %v427 = vld [vmem:[#allocation8 + $0x18] sm:$0xff]
    %v428 = vld [vmem:[#allocation8 + $0x20] sm:$0xff]
    %v429 = vld [vmem:[#allocation8 + $0x28] sm:$0xff]
    %v430 = vld [vmem:[#allocation8 + $0x30] sm:$0xff]
    %v431 = vld [vmem:[#allocation8 + $0x38] sm:$0xff]
    %v432 = vld [vmem:[#allocation8 + $0x40] sm:$0xff]
    %v433 = vld [vmem:[#allocation8 + $0x48] sm:$0xff]
    %v434 = vld [vmem:[#allocation8 + $0x50] sm:$0xff]
    %v435 = vld [vmem:[#allocation8 + $0x58] sm:$0xff]
    %v436 = vld [vmem:[#allocation8 + $0x60] sm:$0xff]
    %v437 = vld [vmem:[#allocation8 + $0x68] sm:$0xff]
    %v438 = vld [vmem:[#allocation8 + $0x70] sm:$0xff]
    %v439 = vld [vmem:[#allocation8 + $0x78] sm:$0xff]
    %v440 = vld [vmem:[#allocation8 + $0x80] sm:$0xff]
    %v441 = vld [vmem:[#allocation8 + $0x88] sm:$0xff]
    %v442 = vld [vmem:[#allocation8 + $0x90] sm:$0xff]
    %v443 = vld [vmem:[#allocation8 + $0x98] sm:$0xff]
    %v444 = vld [vmem:[#allocation8 + $0xa0] sm:$0xff]
    %v445 = vld [vmem:[#allocation8 + $0xa8] sm:$0xff]
    %v446 = vld [vmem:[#allocation8 + $0xb0] sm:$0xff]
    %v447 = vld [vmem:[#allocation8 + $0xb8] sm:$0xff]
    %v448 = vld [vmem:[#allocation8 + $0xc0] sm:$0xff]
    %v449 = vld [vmem:[#allocation8 + $0xc8] sm:$0xff]
    %v450 = vld [vmem:[#allocation8 + $0xd0] sm:$0xff]
    %v451 = vld [vmem:[#allocation8 + $0xd8] sm:$0xff]
    %v452 = vld [vmem:[#allocation8 + $0xe0] sm:$0xff]
    %v453 = vld [vmem:[#allocation8 + $0xe8] sm:$0xff]
    %v454 = vld [vmem:[#allocation8 + $0xf0] sm:$0xff]
    %v455 = vld [vmem:[#allocation8 + $0xf8] sm:$0xff]
    %v457 = vlaneseq
    %v458 = vshrl.u32 %v457, 7
    %v459 = vsub.s32 0, %v458
    %v460 = vrot.slane %v100, %v459
    %v461 = vlaneseq
    %v462 = vshrl.u32 %v461, 7
    %v463 = vsub.s32 1, %v462
    %v464 = vrot.slane %v100, %v463
    %v499 = vunpack.c.l.b16 %v424
    %v500 = vunpack.c.h.b16 %v424
    %v501 = vunpack.c.l.b16 %v425
    %v502 = vunpack.c.h.b16 %v425
    %v503 = vunpack.c.l.b16 %v426
    %v504 = vunpack.c.h.b16 %v426
    %v505 = vunpack.c.l.b16 %v427
    %v506 = vunpack.c.h.b16 %v427
    %v507 = vunpack.c.l.b16 %v428
    %v508 = vunpack.c.h.b16 %v428
    %v509 = vunpack.c.l.b16 %v429
    %v510 = vunpack.c.h.b16 %v429
    %v511 = vunpack.c.l.b16 %v430
    %v512 = vunpack.c.h.b16 %v430
    %v513 = vunpack.c.l.b16 %v431
    %v514 = vunpack.c.h.b16 %v431
    %v515 = vunpack.c.l.b16 %v432
    %v516 = vunpack.c.h.b16 %v432
    %v517 = vunpack.c.l.b16 %v433
    %v518 = vunpack.c.h.b16 %v433
    %v519 = vunpack.c.l.b16 %v434
    %v520 = vunpack.c.h.b16 %v434
    %v521 = vunpack.c.l.b16 %v435
    %v522 = vunpack.c.h.b16 %v435
    %v523 = vunpack.c.l.b16 %v436
    %v524 = vunpack.c.h.b16 %v436
    %v525 = vunpack.c.l.b16 %v437
    %v526 = vunpack.c.h.b16 %v437
    %v527 = vunpack.c.l.b16 %v438
    %v528 = vunpack.c.h.b16 %v438
    %v529 = vunpack.c.l.b16 %v439
    %v530 = vunpack.c.h.b16 %v439
    %v531 = vunpack.c.l.b16 %v440
    %v532 = vunpack.c.h.b16 %v440
    %v533 = vunpack.c.l.b16 %v441
    %v534 = vunpack.c.h.b16 %v441
    %v535 = vunpack.c.l.b16 %v442
    %v536 = vunpack.c.h.b16 %v442
    %v537 = vunpack.c.l.b16 %v443
    %v538 = vunpack.c.h.b16 %v443
    %v539 = vunpack.c.l.b16 %v444
    %v540 = vunpack.c.h.b16 %v444
    %v541 = vunpack.c.l.b16 %v445
    %v542 = vunpack.c.h.b16 %v445
    %v543 = vunpack.c.l.b16 %v446
    %v544 = vunpack.c.h.b16 %v446
    %v545 = vunpack.c.l.b16 %v447
    %v546 = vunpack.c.h.b16 %v447
    %v547 = vunpack.c.l.b16 %v448
    %v548 = vunpack.c.h.b16 %v448
    %v549 = vunpack.c.l.b16 %v449
    %v550 = vunpack.c.h.b16 %v449
    %v551 = vunpack.c.l.b16 %v450
    %v552 = vunpack.c.h.b16 %v450
    %v553 = vunpack.c.l.b16 %v451
    %v554 = vunpack.c.h.b16 %v451
    %v555 = vunpack.c.l.b16 %v452
    %v556 = vunpack.c.h.b16 %v452
    %v557 = vunpack.c.l.b16 %v453
    %v558 = vunpack.c.h.b16 %v453
    %v559 = vunpack.c.l.b16 %v454
    %v560 = vunpack.c.h.b16 %v454
    %v561 = vunpack.c.l.b16 %v455
    %v562 = vunpack.c.h.b16 %v455
    %v563 = vpack.c.b16 %v501, %v499
    %v564 = vpack.c.b16 %v502, %v500
    %v565 = vpack.c.b16 %v505, %v503
    %v566 = vpack.c.b16 %v506, %v504
    %v567 = vpack.c.b16 %v509, %v507
    %v568 = vpack.c.b16 %v510, %v508
    %v569 = vpack.c.b16 %v513, %v511
    %v570 = vpack.c.b16 %v514, %v512
    %v571 = vpack.c.b16 %v517, %v515
    %v572 = vpack.c.b16 %v518, %v516
    %v573 = vpack.c.b16 %v521, %v519
    %v574 = vpack.c.b16 %v522, %v520
    %v575 = vpack.c.b16 %v525, %v523
    %v576 = vpack.c.b16 %v526, %v524
    %v577 = vpack.c.b16 %v529, %v527
    %v578 = vpack.c.b16 %v530, %v528
    %v579 = vpack.c.b16 %v533, %v531
    %v580 = vpack.c.b16 %v534, %v532
    %v581 = vpack.c.b16 %v537, %v535
    %v582 = vpack.c.b16 %v538, %v536
    %v583 = vpack.c.b16 %v541, %v539
    %v584 = vpack.c.b16 %v542, %v540
    %v585 = vpack.c.b16 %v545, %v543
    %v586 = vpack.c.b16 %v546, %v544
    %v587 = vpack.c.b16 %v549, %v547
    %v588 = vpack.c.b16 %v550, %v548
    %v589 = vpack.c.b16 %v553, %v551
    %v590 = vpack.c.b16 %v554, %v552
    %v591 = vpack.c.b16 %v557, %v555
    %v592 = vpack.c.b16 %v558, %v556
    %v593 = vpack.c.b16 %v561, %v559
    %v594 = vpack.c.b16 %v562, %v560
    %627 = vmatprep.subr.bf16.mxu0 %v578
    %628 = vmatpush1.bf16.msra.mxu0 %v577
    %629 = vmatprep.subr.bf16.mxu0 %v576
    %630 = vmatpush1.bf16.msra.mxu0 %v575
    %631 = vmatprep.subr.bf16.mxu0 %v574
    %632 = vmatpush1.bf16.msra.mxu0 %v573
    %633 = vmatprep.subr.bf16.mxu0 %v572
    %634 = vmatpush1.bf16.msra.mxu0 %v571
    %635 = vmatprep.subr.bf16.mxu0 %v570
    %636 = vmatpush1.bf16.msra.mxu0 %v569
    %637 = vmatprep.subr.bf16.mxu0 %v568
    %638 = vmatpush1.bf16.msra.mxu0 %v567
    %639 = vmatprep.subr.bf16.mxu0 %v566
    %640 = vmatpush1.bf16.msra.mxu0 %v565
    %641 = vmatprep.subr.bf16.mxu0 %v564
    %642 = vmatpush1.bf16.msra.mxu0 %v563
    %643 = vmatprep.subr.bf16.mxu0 %v594
    %644 = vmatpush2.bf16.msra.mxu0 %v593
    %645 = vmatprep.subr.bf16.mxu0 %v592
    %646 = vmatpush2.bf16.msra.mxu0 %v591
    %647 = vmatprep.subr.bf16.mxu0 %v590
    %648 = vmatpush2.bf16.msra.mxu0 %v589
    %649 = vmatprep.subr.bf16.mxu0 %v588
    %650 = vmatpush2.bf16.msra.mxu0 %v587
    %651 = vmatprep.subr.bf16.mxu0 %v586
    %652 = vmatpush2.bf16.msra.mxu0 %v585
    %653 = vmatprep.subr.bf16.mxu0 %v584
    %654 = vmatpush2.bf16.msra.mxu0 %v583
    %655 = vmatprep.subr.bf16.mxu0 %v582
    %656 = vmatpush2.bf16.msra.mxu0 %v581
    %657 = vmatprep.subr.bf16.mxu0 %v580
    %658 = vmatpush2.bf16.msra.mxu0 %v579
    %659 = vmatprep.mubr.bf16.mxu0 %v423
    %660 = vmatmul.mubr.bf16.gmra.mxu0 %v422
    %v661 = vpop.f32.mrf.mxu0
    %v662 = vadd.f32 %v460, %v661
    %v663 = vpop.f32.mrf.mxu0
    %v664 = vadd.f32 %v464, %v663
    %v665 = vpop.f32.mrf.mxu0
    %v666 = vpop.f32.mrf.mxu0
    %667 = vdwg.mxu0
    %v668 = vmax.f32 %v662, 0.0
    %v669 = vmax.f32 %v664, 0.0
    %v670 = vpack.c.bf16 %v668, %v668
    %v671 = vpack.c.bf16 %v669, %v669
    %v672 = vld [vmem:[#allocation10] sm:$0xf]
    %v673 = vld [vmem:[#allocation10 + $0x4] sm:$0xf]
    %v674 = vld [vmem:[#allocation10 + $0x8] sm:$0xf]
    %v675 = vld [vmem:[#allocation10 + $0xc] sm:$0xf]
    %v676 = vld [vmem:[#allocation10 + $0x10] sm:$0xf]
    %v677 = vld [vmem:[#allocation10 + $0x14] sm:$0xf]
    %v678 = vld [vmem:[#allocation10 + $0x18] sm:$0xf]
    %v679 = vld [vmem:[#allocation10 + $0x1c] sm:$0xf]
    %v680 = vld [vmem:[#allocation10 + $0x20] sm:$0xf]
    %v681 = vld [vmem:[#allocation10 + $0x24] sm:$0xf]
    %v682 = vld [vmem:[#allocation10 + $0x28] sm:$0xf]
    %v683 = vld [vmem:[#allocation10 + $0x2c] sm:$0xf]
    %v684 = vld [vmem:[#allocation10 + $0x30] sm:$0xf]
    %v685 = vld [vmem:[#allocation10 + $0x34] sm:$0xf]
    %v686 = vld [vmem:[#allocation10 + $0x38] sm:$0xf]
    %v687 = vld [vmem:[#allocation10 + $0x3c] sm:$0xf]
    %v688 = vld [vmem:[#allocation10 + $0x40] sm:$0xf]
    %v689 = vld [vmem:[#allocation10 + $0x44] sm:$0xf]
    %v690 = vld [vmem:[#allocation10 + $0x48] sm:$0xf]
    %v691 = vld [vmem:[#allocation10 + $0x4c] sm:$0xf]
    %v692 = vld [vmem:[#allocation10 + $0x50] sm:$0xf]
    %v693 = vld [vmem:[#allocation10 + $0x54] sm:$0xf]
    %v694 = vld [vmem:[#allocation10 + $0x58] sm:$0xf]
    %v695 = vld [vmem:[#allocation10 + $0x5c] sm:$0xf]
    %v696 = vld [vmem:[#allocation10 + $0x60] sm:$0xf]
    %v697 = vld [vmem:[#allocation10 + $0x64] sm:$0xf]
    %v698 = vld [vmem:[#allocation10 + $0x68] sm:$0xf]
    %v699 = vld [vmem:[#allocation10 + $0x6c] sm:$0xf]
    %v700 = vld [vmem:[#allocation10 + $0x70] sm:$0xf]
    %v701 = vld [vmem:[#allocation10 + $0x74] sm:$0xf]
    %v702 = vld [vmem:[#allocation10 + $0x78] sm:$0xf]
    %v703 = vld [vmem:[#allocation10 + $0x7c] sm:$0xf]
    %v705 = vlaneseq
    %v706 = vshrl.u32 %v705, 7
    %v707 = vsub.s32 0, %v706
    %v708 = vrot.slane %v101, %v707
    %v742 = vunpack.c.l.b16 %v672
    %v743 = vunpack.c.l.b16 %v673
    %v744 = vunpack.c.l.b16 %v674
    %v745 = vunpack.c.l.b16 %v675
    %v746 = vunpack.c.l.b16 %v676
    %v747 = vunpack.c.l.b16 %v677
    %v748 = vunpack.c.l.b16 %v678
    %v749 = vunpack.c.l.b16 %v679
    %v750 = vunpack.c.l.b16 %v680
    %v751 = vunpack.c.l.b16 %v681
    %v752 = vunpack.c.l.b16 %v682
    %v753 = vunpack.c.l.b16 %v683
    %v754 = vunpack.c.l.b16 %v684
    %v755 = vunpack.c.l.b16 %v685
    %v756 = vunpack.c.l.b16 %v686
    %v757 = vunpack.c.l.b16 %v687
    %v758 = vunpack.c.l.b16 %v688
    %v759 = vunpack.c.l.b16 %v689
    %v760 = vunpack.c.l.b16 %v690
    %v761 = vunpack.c.l.b16 %v691
    %v762 = vunpack.c.l.b16 %v692
    %v763 = vunpack.c.l.b16 %v693
    %v764 = vunpack.c.l.b16 %v694
    %v765 = vunpack.c.l.b16 %v695
    %v766 = vunpack.c.l.b16 %v696
    %v767 = vunpack.c.l.b16 %v697
    %v768 = vunpack.c.l.b16 %v698
    %v769 = vunpack.c.l.b16 %v699
    %v770 = vunpack.c.l.b16 %v700
    %v771 = vunpack.c.l.b16 %v701
    %v772 = vunpack.c.l.b16 %v702
    %v773 = vunpack.c.l.b16 %v703
    %v774 = vpack.c.b16 %v743, %v742
    %v775 = vpack.c.b16 %v745, %v744
    %v776 = vpack.c.b16 %v747, %v746
    %v777 = vpack.c.b16 %v749, %v748
    %v778 = vpack.c.b16 %v751, %v750
    %v779 = vpack.c.b16 %v753, %v752
    %v780 = vpack.c.b16 %v755, %v754
    %v781 = vpack.c.b16 %v757, %v756
    %v782 = vpack.c.b16 %v759, %v758
    %v783 = vpack.c.b16 %v761, %v760
    %v784 = vpack.c.b16 %v763, %v762
    %v785 = vpack.c.b16 %v765, %v764
    %v786 = vpack.c.b16 %v767, %v766
    %v787 = vpack.c.b16 %v769, %v768
    %v788 = vpack.c.b16 %v771, %v770
    %v789 = vpack.c.b16 %v773, %v772
    %806 = vmatprep.subr.bf16.mxu0 0
    %807 = vmatpush1.bf16.msra.mxu0 %v781
    %808 = vmatprep.subr.bf16.mxu0 0
    %809 = vmatpush1.bf16.msra.mxu0 %v780
    %810 = vmatprep.subr.bf16.mxu0 0
    %811 = vmatpush1.bf16.msra.mxu0 %v779
    %812 = vmatprep.subr.bf16.mxu0 0
    %813 = vmatpush1.bf16.msra.mxu0 %v778
    %814 = vmatprep.subr.bf16.mxu0 0
    %815 = vmatpush1.bf16.msra.mxu0 %v777
    %816 = vmatprep.subr.bf16.mxu0 0
    %817 = vmatpush1.bf16.msra.mxu0 %v776
    %818 = vmatprep.subr.bf16.mxu0 0
    %819 = vmatpush1.bf16.msra.mxu0 %v775
    %820 = vmatprep.subr.bf16.mxu0 0
    %821 = vmatpush1.bf16.msra.mxu0 %v774
    %822 = vmatprep.subr.bf16.mxu0 0
    %823 = vmatpush2.bf16.msra.mxu0 %v789
    %824 = vmatprep.subr.bf16.mxu0 0
    %825 = vmatpush2.bf16.msra.mxu0 %v788
    %826 = vmatprep.subr.bf16.mxu0 0
    %827 = vmatpush2.bf16.msra.mxu0 %v787
    %828 = vmatprep.subr.bf16.mxu0 0
    %829 = vmatpush2.bf16.msra.mxu0 %v786
    %830 = vmatprep.subr.bf16.mxu0 0
    %831 = vmatpush2.bf16.msra.mxu0 %v785
    %832 = vmatprep.subr.bf16.mxu0 0
    %833 = vmatpush2.bf16.msra.mxu0 %v784
    %834 = vmatprep.subr.bf16.mxu0 0
    %835 = vmatpush2.bf16.msra.mxu0 %v783
    %836 = vmatprep.subr.bf16.mxu0 0
    %837 = vmatpush2.bf16.msra.mxu0 %v782
    %838 = vmatprep.mubr.bf16.mxu0 %v671
    %839 = vmatmul.mubr.bf16.gmra.mxu0 %v670
    %v840 = vpop.f32.mrf.mxu0
    %v841 = vadd.f32 %v708, %v840
    %v842 = vpop.f32.mrf.mxu0
    %v843 = vpop.f32.mrf.mxu0
    %v844 = vpop.f32.mrf.mxu0
    %845 = vdwg.mxu0
    %v846 = vpack.c.bf16 %v841, %v841
    %847 = vst [vmem:[#allocation11] sm:$0xf] %v846
    // Predicated region
    $region58: #{tpu_custom_call.1} parent=1 // pred_check
      _
    $region59: #{tpu_custom_call.1} parent=1 // pred_check_branch
      %849 = sbr.rel (0) target = $region61
    $region60: #{tpu_custom_call.1} parent=1 // pred_region
      %s851 = ssub.s32 64, 64
      %852 = vsyncadd [#allocation4], %s851
      %s854 = sshll.u32 [#allocation11], 4
      %s855 = int_to_ptr.vmem [resolvable:$true] %s854
      %857 = dma.vmem_to_hbm [thread:$0]  %s855, 64, %s9, [#allocation4]
    $region61: #{tpu_custom_call.1} parent=1 // pred_fallthru
      _
    // Predicated region
    $region62: #{tpu_custom_call.1} parent=1 // pred_check
      _
    $region63: #{tpu_custom_call.1} parent=1 // pred_check_branch
      %859 = sbr.rel (0) target = $region65
    $region64: #{tpu_custom_call.1} parent=1 // pred_region
      %860 = dma.done [#allocation4], 64
    $region65: #{tpu_custom_call.1} parent=1 // pred_fallthru
      _
    %861 = vsyncpa [#allocation3], 1
    %862 = vsyncpa [#allocation6], 1
    %863 = vsyncpa [#allocation9], 1
    %864 = vsyncpa [#allocation4], 1

</llo_original>
